<compile_context>
chip_gen: v5e
topology: v5e:2x2
jax: 0.10.0
libtpu: 0.0.40
codegen_flags: <defaults>
</compile_context>

<pallas_src>
import functools

import jax
import jax.numpy as jnp
import numpy as np
from jax.experimental import pallas as pl
from jax.experimental.pallas import tpu as pltpu


def _resblock_kernel(x_ref, wcat_ref, p_ref, o_ref, *, n_out, mxu_dtype):
    x = x_ref[...]                                                    # (tm, n_in) f32

    # Single fused MXU matmul; columns [0, n_out) = Linear(W), [n_out, 2*n_out) = the
    # nearest-exact 0/1 gather matrix G.  Accumulate in f32 regardless of operand dtype.
    h_all = jnp.dot(x.astype(mxu_dtype), wcat_ref[...],
                    preferred_element_type=jnp.float32)               # (tm, 2*n_out) f32
    h = h_all[:, :n_out]                                              # Linear output
    interp = h_all[:, n_out:]                                         # nearest-exact interp

    b = p_ref[0:1, :]                                                 # packed params
    gamma = p_ref[1:2, :]
    beta = p_ref[2:3, :]

    # Linear bias + LayerNorm(eps=1e-5, biased var) + affine + ReLU, all in f32.
    h = h + b
    mean = jnp.mean(h, axis=-1, keepdims=True)
    var = jnp.mean((h - mean) * (h - mean), axis=-1, keepdims=True)
    h = (h - mean) * jax.lax.rsqrt(var + 1e-5)
    h = h * gamma + beta
    h = jnp.maximum(h, 0.0)                                           # ReLU

    o_ref[...] = interp + h


def nearest_exact_gather_matrix(n_in, n_out):
    """0/1 matrix G with G[src, dst] = 1 where src = floor((dst+0.5)*n_in/n_out), clamped."""
    dst = np.arange(n_out)
    src = np.minimum(np.floor((dst + 0.5) * (n_in / n_out)).astype(np.int64), n_in - 1)
    G = np.zeros((n_in, n_out), dtype=np.float32)
    G[src, dst] = 1.0
    return jnp.asarray(G)


def make_resblock_operands(w, b, gamma, beta, *, mxu_dtype=jnp.float32):
    """Precompute the fused [W | G] operand and the packed (3, n_out) param block.

    Done once per ResBlock instance (not per forward call) so the wrapper adds no
    per-call XLA ops.  mxu_dtype=jnp.bfloat16 is recommended on v6e / v7x.
    """
    n_in, n_out = w.shape
    G = nearest_exact_gather_matrix(n_in, n_out)
    wcat = jnp.concatenate([w.astype(jnp.float32), G], axis=1).astype(mxu_dtype)
    params = jnp.stack([b, gamma, beta], axis=0).astype(jnp.float32)  # (3, n_out)
    return wcat, params


def resblock_forward(x, wcat, params, *, tm=None):
    """x: (B, C, n_in) f32; wcat: (n_in, 2*n_out) [W | G]; params: (3, n_out) [b; gamma; beta]."""
    B, C, n_in = x.shape
    assert wcat.shape[0] == n_in
    n_out = wcat.shape[1] // 2
    M = B * C

    # Row tiling: one big tile when the problem is small; 256-row tiles (several
    # "parallel" grid steps, so both v7x TensorCores get work) once M grows.  VMEM note:
    # the resident [W | G] operand is 2*n_in*n_out elements (double-buffered); for
    # hypernetwork sizes this is KB-scale, far below the default scoped limit — re-budget
    # (vmem_limit_bytes / K-tiling of W) only if dims grow into the MB range.
    if tm is None:
        tm = M if M <= 256 else 256
    tm = max(8, -(-tm // 8) * 8)          # round up to sublane multiple
    M_pad = -(-M // tm) * tm              # pad rows so the grid divides evenly

    x2 = x.reshape(M, n_in)
    if M_pad != M:
        x2 = jnp.pad(x2, ((0, M_pad - M), (0, 0)))   # padded rows are sliced off below

    kernel = functools.partial(_resblock_kernel, n_out=n_out, mxu_dtype=wcat.dtype)

    out2 = pl.pallas_call(
        kernel,
        out_shape=jax.ShapeDtypeStruct((M_pad, n_out), jnp.float32),
        grid_spec=pltpu.PrefetchScalarGridSpec(
            num_scalar_prefetch=0,
            grid=(M_pad // tm,),
            in_specs=[
                pl.BlockSpec((tm, n_in), lambda i: (i, 0)),           # x rows (tiled)
                pl.BlockSpec((n_in, 2 * n_out), lambda i: (0, 0)),    # fused [W | G] (resident)
                pl.BlockSpec((3, n_out), lambda i: (0, 0)),           # packed b / gamma / beta
            ],
            out_specs=pl.BlockSpec((tm, n_out), lambda i: (i, 0)),
        ),
        compiler_params=pltpu.CompilerParams(dimension_semantics=("parallel",)),
    )(x2, wcat, params)

    return out2[:M].reshape(B, C, n_out)


def reference_forward(x, w, b, gamma, beta, n_out):
    """Pure-JAX reference of the ResBlock forward (eval mode), f32 throughout."""
    B, C, n_in = x.shape
    h = jnp.einsum("bci,io->bco", x, w) + b
    mean = jnp.mean(h, axis=-1, keepdims=True)
    var = jnp.mean((h - mean) ** 2, axis=-1, keepdims=True)
    h = (h - mean) / jnp.sqrt(var + 1e-5)
    h = h * gamma + beta
    h = jnp.maximum(h, 0.0)
    dst = jnp.arange(n_out)
    src = jnp.minimum(jnp.floor((dst + 0.5) * (n_in / n_out)).astype(jnp.int32), n_in - 1)
    interp = x[..., src]
    return interp + h


if __name__ == "__main__":
    # ResBlock(n_inputs=64, n_outputs=32, activation_func='relu', weight_init='Normal',
    #          add_layer_norm=True, dropout_p=0.0, normal_std=0.01)   — eval mode.
    B, C, n_in, n_out = 2, 16, 64, 32
    normal_std = 0.01

    key = jax.random.PRNGKey(0)
    kx, kw, kg = jax.random.split(key, 3)

    x = jax.random.normal(kx, (B, C, n_in), dtype=jnp.float32)

    # init_weight(weight_init='Normal'): Linear.weight ~ N(0, 0.01), Linear.bias = 0;
    # LayerNorm.weight ~ N(0, 0.01), LayerNorm.bias = 0.
    w = normal_std * jax.random.normal(kw, (n_in, n_out), dtype=jnp.float32)  # == torch W.T
    b = jnp.zeros((n_out,), dtype=jnp.float32)
    gamma = normal_std * jax.random.normal(kg, (n_out,), dtype=jnp.float32)
    beta = jnp.zeros((n_out,), dtype=jnp.float32)

    ref = reference_forward(x, w, b, gamma, beta, n_out)

    # 1) Exact f32 MXU operands — matches the PyTorch module within fp32 rounding.
    wcat_f32, params = make_resblock_operands(w, b, gamma, beta, mxu_dtype=jnp.float32)
    out_f32 = jax.block_until_ready(resblock_forward(x, wcat_f32, params))
    np.testing.assert_allclose(np.asarray(out_f32), np.asarray(ref), rtol=1e-5, atol=1e-5)

    # 2) bf16 MXU operands (recommended on v6e / v7x).  Accumulation, LayerNorm stats and
    #    the residual add stay f32; the only error source is the ~2^-9 relative rounding
    #    of the matmul operands, hence the looser tolerance.
    wcat_bf16, params_bf16 = make_resblock_operands(w, b, gamma, beta, mxu_dtype=jnp.bfloat16)
    out_bf16 = jax.block_until_ready(resblock_forward(x, wcat_bf16, params_bf16))
    np.testing.assert_allclose(np.asarray(out_bf16), np.asarray(ref), rtol=1e-2, atol=2e-3)

    print("KERNEL_OK")
</pallas_src>

<mosaic_0001>
module attributes {stable_mosaic.version = 11 : i64} {
  func.func @_resblock_kernel(%arg0: i32, %arg1: memref<32x64xf32, #tpu.memory_space<vmem>>, %arg2: memref<64x64xf32, #tpu.memory_space<vmem>>, %arg3: memref<3x32xf32, #tpu.memory_space<vmem>>, %arg4: memref<32x32xf32, #tpu.memory_space<vmem>>) attributes {dimension_semantics = [#tpu.dimension_semantics<parallel>], iteration_bounds = array<i64: 1>, scalar_prefetch = 0 : i64, scratch_operands = 0 : i64, tpu.core_type = #tpu.core_type<tc>, window_params = [{transform_indices = @transform_0, window_bounds = array<i64: 32, 64>}, {pipeline_mode = #tpu.pipeline_mode<synchronous>, transform_indices = @transform_1, window_bounds = array<i64: 64, 64>}, {pipeline_mode = #tpu.pipeline_mode<synchronous>, transform_indices = @transform_2, window_bounds = array<i64: 3, 32>}, {transform_indices = @transform_3, window_bounds = array<i64: 32, 32>}]} {
    %c0 = arith.constant 0 : index
    %c0_0 = arith.constant 0 : index
    %0 = vector.load %arg1[%c0, %c0_0] : memref<32x64xf32, #tpu.memory_space<vmem>>, vector<32x64xf32>
    %c0_1 = arith.constant 0 : index
    %c0_2 = arith.constant 0 : index
    %1 = vector.load %arg2[%c0_1, %c0_2] : memref<64x64xf32, #tpu.memory_space<vmem>>, vector<64x64xf32>
    %cst = arith.constant dense<0.000000e+00> : vector<32x64xf32>
    %2 = tpu.matmul %0, %1, %cst {dimension_numbers = #tpu.dot_dimension_numbers<[1], [0], [0], [1], [0, 0, 1, 1], [], []>} : vector<32x64xf32>, vector<64x64xf32>, vector<32x64xf32> -> vector<32x64xf32>
    %3 = vector.extract_strided_slice %2 {offsets = [0, 0], sizes = [32, 32], strides = [1, 1]} : vector<32x64xf32> to vector<32x32xf32>
    %4 = vector.extract_strided_slice %2 {offsets = [0, 32], sizes = [32, 32], strides = [1, 1]} : vector<32x64xf32> to vector<32x32xf32>
    %c0_3 = arith.constant 0 : index
    %c0_4 = arith.constant 0 : index
    %5 = vector.load %arg3[%c0_3, %c0_4] : memref<3x32xf32, #tpu.memory_space<vmem>>, vector<1x32xf32>
    %c1 = arith.constant 1 : index
    %c0_5 = arith.constant 0 : index
    %6 = vector.load %arg3[%c1, %c0_5] : memref<3x32xf32, #tpu.memory_space<vmem>>, vector<1x32xf32>
    %c2 = arith.constant 2 : index
    %c0_6 = arith.constant 0 : index
    %7 = vector.load %arg3[%c2, %c0_6] : memref<3x32xf32, #tpu.memory_space<vmem>>, vector<1x32xf32>
    %8 = vector.broadcast %5 : vector<1x32xf32> to vector<32x32xf32>
    %9 = arith.addf %3, %8 : vector<32x32xf32>
    %cst_7 = arith.constant dense<0.000000e+00> : vector<32xf32>
    %10 = vector.multi_reduction <add>, %9, %cst_7 [1] : vector<32x32xf32> to vector<32xf32>
    %11 = vector.shape_cast %10 : vector<32xf32> to vector<32x1xf32>
    %cst_8 = arith.constant 3.200000e+01 : f32
    %12 = vector.broadcast %cst_8 : f32 to vector<32x1xf32>
    %13 = arith.divf %11, %12 : vector<32x1xf32>
    %14 = vector.broadcast %13 : vector<32x1xf32> to vector<32x32xf32>
    %15 = arith.subf %9, %14 : vector<32x32xf32>
    %16 = vector.broadcast %13 : vector<32x1xf32> to vector<32x32xf32>
    %17 = arith.subf %9, %16 : vector<32x32xf32>
    %18 = arith.mulf %15, %17 : vector<32x32xf32>
    %cst_9 = arith.constant dense<0.000000e+00> : vector<32xf32>
    %19 = vector.multi_reduction <add>, %18, %cst_9 [1] : vector<32x32xf32> to vector<32xf32>
    %20 = vector.shape_cast %19 : vector<32xf32> to vector<32x1xf32>
    %cst_10 = arith.constant 3.200000e+01 : f32
    %21 = vector.broadcast %cst_10 : f32 to vector<32x1xf32>
    %22 = arith.divf %20, %21 : vector<32x1xf32>
    %23 = vector.broadcast %13 : vector<32x1xf32> to vector<32x32xf32>
    %24 = arith.subf %9, %23 : vector<32x32xf32>
    %cst_11 = arith.constant 9.99999974E-6 : f32
    %25 = vector.broadcast %cst_11 : f32 to vector<32x1xf32>
    %26 = arith.addf %22, %25 : vector<32x1xf32>
    %27 = math.rsqrt %26 : vector<32x1xf32>
    %28 = vector.broadcast %27 : vector<32x1xf32> to vector<32x32xf32>
    %29 = arith.mulf %24, %28 : vector<32x32xf32>
    %30 = vector.broadcast %6 : vector<1x32xf32> to vector<32x32xf32>
    %31 = arith.mulf %29, %30 : vector<32x32xf32>
    %32 = vector.broadcast %7 : vector<1x32xf32> to vector<32x32xf32>
    %33 = arith.addf %31, %32 : vector<32x32xf32>
    %cst_12 = arith.constant 0.000000e+00 : f32
    %34 = vector.broadcast %cst_12 : f32 to vector<32x32xf32>
    %35 = arith.maximumf %33, %34 : vector<32x32xf32>
    %36 = arith.addf %4, %35 : vector<32x32xf32>
    %c0_13 = arith.constant 0 : index
    %c0_14 = arith.constant 0 : index
    %37 = vector.load %arg4[%c0_13, %c0_14] : memref<32x32xf32, #tpu.memory_space<vmem>>, vector<32x32xf32>
    tpu.vector_store %arg4[%c0_13, %c0_14], %36 {strides = array<i32>} : memref<32x32xf32, #tpu.memory_space<vmem>>, vector<32x32xf32>,
    return
  }
  func.func @transform_0(%arg0: i32) -> (i32, i32) {
    %c0_i32 = arith.constant 0 : i32
    %c0_i32_0 = arith.constant 0 : i32
    return %arg0, %c0_i32 : i32, i32
  }
  func.func @transform_1(%arg0: i32) -> (i32, i32) {
    %c0_i32 = arith.constant 0 : i32
    %c0_i32_0 = arith.constant 0 : i32
    %c0_i32_1 = arith.constant 0 : i32
    return %c0_i32, %c0_i32_0 : i32, i32
  }
  func.func @transform_2(%arg0: i32) -> (i32, i32) {
    %c0_i32 = arith.constant 0 : i32
    %c0_i32_0 = arith.constant 0 : i32
    %c0_i32_1 = arith.constant 0 : i32
    return %c0_i32, %c0_i32_0 : i32, i32
  }
  func.func @transform_3(%arg0: i32) -> (i32, i32) {
    %c0_i32 = arith.constant 0 : i32
    %c0_i32_0 = arith.constant 0 : i32
    return %arg0, %c0_i32 : i32, i32
  }
}

</mosaic_0001>

<llo_original>
// kernel: tpu_custom_call.1
$region0: #{tpu_custom_call.1}
  #allocation0 [shape = 'u32[]', space=smem, size = 0x4, offset = 0x4, fixed_abs, tag = 'smem constant byte address 0x4 - core index']
  #allocation1 [shape = 'u32[72,128]{1,0:T(1,128)}', space=vmem, size = 0x9000, scoped, tag = 'internal scratch']
  %s0 = inlined_call_operand.hbm [shape: f32[32,64], index: 0, kind: input, shape index: {}]
  %s1 = inlined_call_operand.hbm [shape: f32[64,64], index: 1, kind: input, shape index: {}]
  %s2 = inlined_call_operand.hbm [shape: f32[3,32], index: 2, kind: input, shape index: {}]
  %s3 = inlined_call_operand.hbm [shape: f32[32,32], index: 3, kind: output, shape index: {}]
  %s4 = sld [smem:[#allocation0]]
  $region34: #{tpu_custom_call.1} parent=0
    _
  %s6 = ssub.s32 1, %s4
  %s7 = scalar_select 0, %s6, %s4
  $region1: #{tpu_custom_call.1} parent=0
    #allocation2 [shape = 'u8[16384]{0}', space=vmem, size = 0x4000, scoped, tag = 'input window, operand 0, single buffered']
    #allocation3 [shape = 's32[1]{0}', space=sflag, size = 0x4, scoped, tag = 'scoped memory for tpu_custom_call.1']
    #allocation4 [shape = 's32[1]{0}', space=sflag, size = 0x4, scoped, tag = 'scoped memory for tpu_custom_call.1']
    #allocation5 [shape = 'u8[32768]{0}', space=vmem, size = 0x8000, scoped, tag = 'input window, operand 1, single buffered']
    #allocation6 [shape = 's32[1]{0}', space=sflag, size = 0x4, scoped, tag = 'scoped memory for tpu_custom_call.1']
    #allocation7 [shape = 'u8[2048]{0}', space=vmem, size = 0x800, scoped, tag = 'input window, operand 2, single buffered']
    #allocation8 [shape = 'u8[16384]{0}', space=vmem, size = 0x4000, scoped, tag = 'output window, operand 0, single buffered']
    %8 = vsyncpa [#allocation3], 0
    %9 = vsyncpa [#allocation6], 0
    %10 = vsyncpa [#allocation4], 0
    // Predicated region
    $region2: #{tpu_custom_call.1} parent=1 // pred_check
      _
    $region3: #{tpu_custom_call.1} parent=1 // pred_check_branch
      %12 = sbr.rel (0) target = $region5
    $region4: #{tpu_custom_call.1} parent=1 // pred_region
      %14 = vsyncadd [#allocation3], 0
      %s15 = sshll.u32 %s0, 4
      %s16 = int_to_ptr.hbm [resolvable:$true] %s15
      %s17 = sshll.u32 [#allocation2], 4
      %s18 = int_to_ptr.vmem [resolvable:$true] %s17
      %23 = dma.hbm_to_vmem [thread:$0]  %s16, 512, %s18, [#allocation3], 128, 128, 8
    $region5: #{tpu_custom_call.1} parent=1 // pred_fallthru
      _
    // Predicated region
    $region6: #{tpu_custom_call.1} parent=1 // pred_check
      _
    $region7: #{tpu_custom_call.1} parent=1 // pred_check_branch
      %25 = sbr.rel (0) target = $region9
    $region8: #{tpu_custom_call.1} parent=1 // pred_region
      %27 = vsyncadd [#allocation6], 0
      %s28 = sshll.u32 %s1, 4
      %s29 = int_to_ptr.hbm [resolvable:$true] %s28
      %s30 = sshll.u32 [#allocation5], 4
      %s31 = int_to_ptr.vmem [resolvable:$true] %s30
      %36 = dma.hbm_to_vmem [thread:$0]  %s29, 1024, %s31, [#allocation6], 128, 128, 8
    $region9: #{tpu_custom_call.1} parent=1 // pred_fallthru
      _
    // Predicated region
    $region10: #{tpu_custom_call.1} parent=1 // pred_check
      _
    $region11: #{tpu_custom_call.1} parent=1 // pred_check_branch
      %38 = sbr.rel (0) target = $region13
    $region12: #{tpu_custom_call.1} parent=1 // pred_region
      %40 = vsyncadd [#allocation6], 0
      %s42 = sshll.u32 %s2, 4
      %s43 = int_to_ptr.hbm [resolvable:$true] %s42
      %s44 = sshll.u32 [#allocation7], 4
      %s45 = int_to_ptr.vmem [resolvable:$true] %s44
      %47 = dma.hbm_to_vmem [thread:$0]  %s43, 64, %s45, [#allocation6]
    $region13: #{tpu_custom_call.1} parent=1 // pred_fallthru
      _
    // Predicated region
    $region14: #{tpu_custom_call.1} parent=1 // pred_check
      _
    $region15: #{tpu_custom_call.1} parent=1 // pred_check_branch
      %49 = sbr.rel (0) target = $region17
    $region16: #{tpu_custom_call.1} parent=1 // pred_region
      %51 = dma.done [#allocation3], 512
    $region17: #{tpu_custom_call.1} parent=1 // pred_fallthru
      _
    // Predicated region
    $region18: #{tpu_custom_call.1} parent=1 // pred_check
      _
    $region19: #{tpu_custom_call.1} parent=1 // pred_check_branch
      %53 = sbr.rel (0) target = $region21
    $region20: #{tpu_custom_call.1} parent=1 // pred_region
      %55 = dma.done [#allocation6], 1024
    $region21: #{tpu_custom_call.1} parent=1 // pred_fallthru
      _
    // Predicated region
    $region22: #{tpu_custom_call.1} parent=1 // pred_check
      _
    $region23: #{tpu_custom_call.1} parent=1 // pred_check_branch
      %57 = sbr.rel (0) target = $region25
    $region24: #{tpu_custom_call.1} parent=1 // pred_region
      %59 = dma.done [#allocation6], 64
    $region25: #{tpu_custom_call.1} parent=1 // pred_fallthru
      _
    %v60 = vld [vmem:[#allocation2] sm:$0xff]
    %v61 = vld [vmem:[#allocation2 + $0x8] sm:$0xff]
    %v62 = vld [vmem:[#allocation2 + $0x10] sm:$0xff]
    %v63 = vld [vmem:[#allocation2 + $0x18] sm:$0xff]
    %v64 = vld [vmem:[#allocation5] sm:$0xff]
    %v65 = vld [vmem:[#allocation5 + $0x8] sm:$0xff]
    %v66 = vld [vmem:[#allocation5 + $0x10] sm:$0xff]
    %v67 = vld [vmem:[#allocation5 + $0x18] sm:$0xff]
    %v68 = vld [vmem:[#allocation5 + $0x20] sm:$0xff]
    %v69 = vld [vmem:[#allocation5 + $0x28] sm:$0xff]
    %v70 = vld [vmem:[#allocation5 + $0x30] sm:$0xff]
    %v71 = vld [vmem:[#allocation5 + $0x38] sm:$0xff]
    %vm72 = vcmask 523264
    %v74 = vsel %vm72, %v60, 0
    %v77 = vsel %vm72, %v61, 0
    %v80 = vsel %vm72, %v62, 0
    %v83 = vsel %vm72, %v63, 0
    %85 = vmatpush.msra.mxu0 0.0
    %86 = vmatpush.msra.mxu0 0.0
    %87 = vmatpush.msra.mxu0 0.0
    %88 = vmatpush.msra.mxu0 0.0
    %89 = vmatpush.msra.mxu0 0.0
    %90 = vmatpush.msra.mxu0 0.0
    %91 = vmatpush.msra.mxu0 0.0
    %92 = vmatpush.msra.mxu0 0.0
    %93 = vmatpush.msra.mxu0 %v71
    %94 = vmatpush.msra.mxu0 %v70
    %95 = vmatpush.msra.mxu0 %v69
    %96 = vmatpush.msra.mxu0 %v68
    %97 = vmatpush.msra.mxu0 %v67
    %98 = vmatpush.msra.mxu0 %v66
    %99 = vmatpush.msra.mxu0 %v65
    %100 = vmatpush.msra.mxu0 %v64
    %101 = vmatmul.f32.gmra.mxu0 %v74
    %v102 = vpop.f32.mrf.mxu0
    %v103 = vadd.f32 0.0, %v102
    %104 = vmatmul.f32.gmra.mxu0 %v77
    %v105 = vpop.f32.mrf.mxu0
    %v106 = vadd.f32 0.0, %v105
    %107 = vmatmul.f32.gmra.mxu0 %v80
    %v108 = vpop.f32.mrf.mxu0
    %v109 = vadd.f32 0.0, %v108
    %110 = vmatmul.f32.gmra.mxu0 %v83
    %v111 = vpop.f32.mrf.mxu0
    %v112 = vadd.f32 0.0, %v111
    %113 = vdwg.mxu0
    %v114 = vld [vmem:[#allocation7] sm:$0x1]
    %v115 = vld [vmem:[#allocation7 + $0x1] sm:$0x1]
    %v116 = vld [vmem:[#allocation7 + $0x2] sm:$0x1]
    %v117 = vperm.slane %v114, 0
    %v118 = vadd.f32 %v103, %v117
    %v119 = vadd.f32 %v106, %v117
    %v120 = vadd.f32 %v109, %v117
    %v121 = vadd.f32 %v112, %v117
    %vm122 = vcmask 261120
    %v123 = vsel %vm122, %v118, 0.0
    %124 = vadd.xlane.f32.xlu0 %v123
    %v125 = vpop.xlane.xlu0 %124
    %v126 = vsel %vm122, %v119, 0.0
    %127 = vadd.xlane.f32.xlu0 %v126
    %v128 = vpop.xlane.xlu0 %127
    %v129 = vsel %vm122, %v120, 0.0
    %130 = vadd.xlane.f32.xlu0 %v129
    %v131 = vpop.xlane.xlu0 %130
    %v132 = vsel %vm122, %v121, 0.0
    %133 = vadd.xlane.f32.xlu0 %v132
    %v134 = vpop.xlane.xlu0 %133
    %v135 = vrcp.pop 32.0
    %v136 = vmul.f32 32.0, %v135
    %v137 = vsub.f32 1.0, %v136
    %v138 = vmul.f32 %v135, %v137
    %v139 = vadd.f32 %v135, %v138
    %vm140 = vweird.f32 %v135
    %v141 = vsel %vm140, %v135, %v139
    %v142 = vmul.f32 %v125, %v141
    %v143 = vmul.f32 %v128, %v141
    %v144 = vmul.f32 %v131, %v141
    %v145 = vmul.f32 %v134, %v141
    %v146 = vsub.f32 %v118, %v142
    %v147 = vsub.f32 %v119, %v143
    %v148 = vsub.f32 %v120, %v144
    %v149 = vsub.f32 %v121, %v145
    %v150 = vmul.f32 %v146, %v146
    %v151 = vmul.f32 %v147, %v147
    %v152 = vmul.f32 %v148, %v148
    %v153 = vmul.f32 %v149, %v149
    %v154 = vsel %vm122, %v150, 0.0
    %155 = vadd.xlane.f32.xlu0 %v154
    %v156 = vpop.xlane.xlu0 %155
    %v157 = vsel %vm122, %v151, 0.0
    %158 = vadd.xlane.f32.xlu0 %v157
    %v159 = vpop.xlane.xlu0 %158
    %v160 = vsel %vm122, %v152, 0.0
    %161 = vadd.xlane.f32.xlu0 %v160
    %v162 = vpop.xlane.xlu0 %161
    %v163 = vsel %vm122, %v153, 0.0
    %164 = vadd.xlane.f32.xlu0 %v163
    %v165 = vpop.xlane.xlu0 %164
    %v166 = vmul.f32 %v156, %v141
    %v167 = vmul.f32 %v159, %v141
    %v168 = vmul.f32 %v162, %v141
    %v169 = vmul.f32 %v165, %v141
    %v170 = vadd.f32 %v166, 1e-05
    %v171 = vadd.f32 %v167, 1e-05
    %v172 = vadd.f32 %v168, 1e-05
    %v173 = vadd.f32 %v169, 1e-05
    %v174 = vrsqrt.pop %v170
    %v175 = vmul.f32 %v174, %v170
    %v176 = vmul.f32 %v175, %v174
    %v177 = vmul.f32 0.5, %v176
    %v178 = vsub.f32 1.5, %v177
    %v179 = vmul.f32 %v174, %v178
    %vm180 = vweird.f32 %v170
    %vm181 = vweird.f32 %v174
    %vm182 = vmor %vm180, %vm181
    %v183 = vsel %vm182, %v174, %v179
    %v184 = vrsqrt.pop %v171
    %v185 = vmul.f32 %v184, %v171
    %v186 = vmul.f32 %v185, %v184
    %v187 = vmul.f32 0.5, %v186
    %v188 = vsub.f32 1.5, %v187
    %v189 = vmul.f32 %v184, %v188
    %vm190 = vweird.f32 %v171
    %vm191 = vweird.f32 %v184
    %vm192 = vmor %vm190, %vm191
    %v193 = vsel %vm192, %v184, %v189
    %v194 = vrsqrt.pop %v172
    %v195 = vmul.f32 %v194, %v172
    %v196 = vmul.f32 %v195, %v194
    %v197 = vmul.f32 0.5, %v196
    %v198 = vsub.f32 1.5, %v197
    %v199 = vmul.f32 %v194, %v198
    %vm200 = vweird.f32 %v172
    %vm201 = vweird.f32 %v194
    %vm202 = vmor %vm200, %vm201
    %v203 = vsel %vm202, %v194, %v199
    %v204 = vrsqrt.pop %v173
    %v205 = vmul.f32 %v204, %v173
    %v206 = vmul.f32 %v205, %v204
    %v207 = vmul.f32 0.5, %v206
    %v208 = vsub.f32 1.5, %v207
    %v209 = vmul.f32 %v204, %v208
    %vm210 = vweird.f32 %v173
    %vm211 = vweird.f32 %v204
    %vm212 = vmor %vm210, %vm211
    %v213 = vsel %vm212, %v204, %v209
    %v214 = vmul.f32 %v146, %v183
    %v215 = vmul.f32 %v147, %v193
    %v216 = vmul.f32 %v148, %v203
    %v217 = vmul.f32 %v149, %v213
    %v218 = vperm.slane %v115, 0
    %v219 = vmul.f32 %v214, %v218
    %v220 = vmul.f32 %v215, %v218
    %v221 = vmul.f32 %v216, %v218
    %v222 = vmul.f32 %v217, %v218
    %v223 = vperm.slane %v116, 0
    %v224 = vadd.f32 %v219, %v223
    %v225 = vadd.f32 %v220, %v223
    %v226 = vadd.f32 %v221, %v223
    %v227 = vadd.f32 %v222, %v223
    %v228 = vmax.f32 %v224, 0.0
    %v229 = vmax.f32 %v225, 0.0
    %v230 = vmax.f32 %v226, 0.0
    %v231 = vmax.f32 %v227, 0.0
    %236 = vrot.lane.b32.xlu0 %v228, 32
    %v237 = vpop.permute.xlu0 %236
    %238 = vrot.lane.b32.xlu0 %v229, 32
    %v239 = vpop.permute.xlu0 %238
    %240 = vrot.lane.b32.xlu0 %v230, 32
    %v241 = vpop.permute.xlu0 %240
    %242 = vrot.lane.b32.xlu0 %v231, 32
    %v243 = vpop.permute.xlu0 %242
    %v248 = vadd.f32 %v103, %v237
    %v249 = vadd.f32 %v106, %v239
    %v250 = vadd.f32 %v109, %v241
    %v251 = vadd.f32 %v112, %v243
    %256 = vrot.lane.b32.xlu0 %v248, 96
    %v257 = vpop.permute.xlu0 %256
    %258 = vrot.lane.b32.xlu0 %v249, 96
    %v259 = vpop.permute.xlu0 %258
    %260 = vrot.lane.b32.xlu0 %v250, 96
    %v261 = vpop.permute.xlu0 %260
    %262 = vrot.lane.b32.xlu0 %v251, 96
    %v263 = vpop.permute.xlu0 %262
    %268 = vst.msk [vmem:[#allocation8] sm:$0xff] %vm122, %v257
    %269 = vst.msk [vmem:[#allocation8 + $0x8] sm:$0xff] %vm122, %v259
    %270 = vst.msk [vmem:[#allocation8 + $0x10] sm:$0xff] %vm122, %v261
    %271 = vst.msk [vmem:[#allocation8 + $0x18] sm:$0xff] %vm122, %v263
    // Predicated region
    $region26: #{tpu_custom_call.1} parent=1 // pred_check
      _
    $region27: #{tpu_custom_call.1} parent=1 // pred_check_branch
      %273 = sbr.rel (0) target = $region29
    $region28: #{tpu_custom_call.1} parent=1 // pred_region
      %275 = vsyncadd [#allocation4], 0
      %s276 = sshll.u32 [#allocation8], 4
      %s277 = int_to_ptr.vmem [resolvable:$true] %s276
      %s278 = sshll.u32 %s3, 4
      %s279 = int_to_ptr.hbm [resolvable:$true] %s278
      %284 = dma.vmem_to_hbm [thread:$0]  %s277, 512, %s279, [#allocation4], 128, 128, 8
    $region29: #{tpu_custom_call.1} parent=1 // pred_fallthru
      _
    // Predicated region
    $region30: #{tpu_custom_call.1} parent=1 // pred_check
      _
    $region31: #{tpu_custom_call.1} parent=1 // pred_check_branch
      %286 = sbr.rel (0) target = $region33
    $region32: #{tpu_custom_call.1} parent=1 // pred_region
      %288 = dma.done [#allocation4], 512
    $region33: #{tpu_custom_call.1} parent=1 // pred_fallthru
      _
    %289 = vsyncpa [#allocation3], 1
    %290 = vsyncpa [#allocation6], 1
    %291 = vsyncpa [#allocation4], 1

</llo_original>
